<compile_context>
chip_gen: v5e
topology: v5e:2x2
jax: 0.10.0
libtpu: 0.0.40
codegen_flags: <defaults>
</compile_context>

<pallas_src>
import jax
import jax.numpy as jnp
from jax.experimental import pallas as pl
from jax.experimental.pallas import tpu as pltpu

LN_EPS = 1e-5  # PyTorch nn.LayerNorm default eps


def _round_up(v, m):
    return (v + m - 1) // m * m


def _attention_kernel(x_ref, s_ref, g1_ref, be1_ref, w1_ref, b1_ref,
                      w2_ref, b2_ref, g2_ref, be2_ref, out_ref):
    # x_ref: (N, TB, D)   s_ref: (N, TB, S)   out_ref: (TB, S)
    n = x_ref.shape[0]

    # Hoist parameter loads once per grid step.
    g1 = g1_ref[...]          # (1, D)
    be1 = be1_ref[...]        # (1, D)
    w1 = w1_ref[...]          # (D, H)
    b1 = b1_ref[...]          # (1, H)
    w2 = w2_ref[...]          # (1, H)  == Linear(H, 1) weight transposed
    b2 = b2_ref[0, 0]         # scalar from SMEM
    g2 = g2_ref[...]          # (1, S)
    be2 = be2_ref[...]        # (1, S)

    # ---- attention logits, one dense (TB, D) slab per model j ----
    logits = []
    for j in range(n):
        xj = x_ref[j]                                             # (TB, D)
        mu = jnp.mean(xj, axis=-1, keepdims=True)
        var = jnp.mean(jnp.square(xj - mu), axis=-1, keepdims=True)
        xn = (xj - mu) * jax.lax.rsqrt(var + LN_EPS) * g1 + be1    # (TB, D)
        h = jnp.dot(xn, w1, preferred_element_type=jnp.float32) + b1
        h = jnp.maximum(h, 0.0)                                    # (TB, H)
        # Linear(H -> 1) + ReLU (RecBole applies activation after last Linear)
        lg = jnp.sum(h * w2, axis=-1, keepdims=True) + b2          # (TB, 1)
        logits.append(jnp.maximum(lg, 0.0))

    # ---- softmax over the model axis (unrolled, pure VPU elementwise) ----
    m = logits[0]
    for j in range(1, n):
        m = jnp.maximum(m, logits[j])
    exps = [jnp.exp(lg - m) for lg in logits]
    denom = exps[0]
    for j in range(1, n):
        denom = denom + exps[j]
    inv = 1.0 / denom                                              # (TB, 1)

    # ---- scores LayerNorm + weighted fusion over the model axis ----
    acc = None
    for j in range(n):
        sj = s_ref[j]                                              # (TB, S)
        mus = jnp.mean(sj, axis=-1, keepdims=True)
        vs = jnp.mean(jnp.square(sj - mus), axis=-1, keepdims=True)
        sn = (sj - mus) * jax.lax.rsqrt(vs + LN_EPS) * g2 + be2    # (TB, S)
        term = (exps[j] * inv) * sn
        acc = term if acc is None else acc + term
    out_ref[...] = acc                                             # (TB, S)


def attention_module_forward(x, s, params, block_b=512):
    """x: (B, N, D) last_layer_list, s: (B, N, S) scores_list -> (B, S)."""
    B, N, D = x.shape
    S = s.shape[-1]
    H = params["w1"].shape[1]

    # Layout plumbing: model axis leading -> dense per-model slabs in-kernel.
    xt = jnp.transpose(x, (1, 0, 2)).astype(jnp.float32)   # (N, B, D)
    st = jnp.transpose(s, (1, 0, 2)).astype(jnp.float32)   # (N, B, S)

    # Batch tile: sublane-aligned (multiple of 8), capped by block_b.
    tb = min(block_b, _round_up(B, 8))
    tb = max(8, _round_up(tb, 8))
    b_pad = _round_up(B, tb)
    if b_pad != B:
        # Zero padding is numerically safe (LN of zeros -> beta; sliced off).
        xt = jnp.pad(xt, ((0, 0), (0, b_pad - B), (0, 0)))
        st = jnp.pad(st, ((0, 0), (0, b_pad - B), (0, 0)))
    grid = (b_pad // tb,)

    def rep_spec(shape):
        # Small parameter block, same block every grid step (stays resident).
        return pl.BlockSpec(shape, lambda b: tuple(0 for _ in shape))

    out = pl.pallas_call(
        _attention_kernel,
        out_shape=jax.ShapeDtypeStruct((b_pad, S), jnp.float32),
        grid=grid,
        in_specs=[
            pl.BlockSpec((N, tb, D), lambda b: (0, b, 0)),   # last_layer_list^T
            pl.BlockSpec((N, tb, S), lambda b: (0, b, 0)),   # scores_list^T
            rep_spec((1, D)),                                # input LN gamma
            rep_spec((1, D)),                                # input LN beta
            rep_spec((D, H)),                                # Linear1 weight
            rep_spec((1, H)),                                # Linear1 bias
            rep_spec((1, H)),                                # Linear2 weight (1, H)
            pl.BlockSpec(memory_space=pltpu.MemorySpace.SMEM),  # Linear2 bias scalar
            rep_spec((1, S)),                                # scores LN gamma
            rep_spec((1, S)),                                # scores LN beta
        ],
        out_specs=pl.BlockSpec((tb, S), lambda b: (b, 0)),   # lane/sublane dense
        compiler_params=pltpu.CompilerParams(
            dimension_semantics=("parallel",),               # >=2 steps shard across TCs
            vmem_limit_bytes=48 * 1024 * 1024,               # big-TB headroom, < v7x 64 MiB
        ),
    )(xt, st, params["ln1_g"], params["ln1_b"], params["w1"], params["b1"],
      params["w2"], params["b2"], params["ln2_g"], params["ln2_b"])
    return out[:B]                                           # (B, S)


def reference_forward(x, s, p):
    """Pure-JAX reference matching the PyTorch module."""
    def ln(v, g, b):
        mu = v.mean(-1, keepdims=True)
        var = ((v - mu) ** 2).mean(-1, keepdims=True)
        return (v - mu) / jnp.sqrt(var + LN_EPS) * g + b

    xn = ln(x, p["ln1_g"][0], p["ln1_b"][0])
    h = jnp.maximum(xn @ p["w1"] + p["b1"][0], 0.0)
    logit = jnp.maximum(jnp.sum(h * p["w2"][0], -1, keepdims=True) + p["b2"][0, 0], 0.0)
    att = jax.nn.softmax(logit, axis=-2)
    sn = ln(s, p["ln2_g"][0], p["ln2_b"][0])
    return (att * sn).sum(1)


if __name__ == "__main__":
    # Small shapes implied by the module: B batches, N "models" being fused,
    # input_size D, one hidden layer H, scores_size S (= num items).
    B, N, D, H, S = 16, 4, 32, 16, 128

    key = jax.random.PRNGKey(0)
    k1, k2, k3, k4, k5, k6 = jax.random.split(key, 6)
    x = jax.random.normal(k1, (B, N, D), jnp.float32)   # last_layer_list
    s = jax.random.normal(k2, (B, N, S), jnp.float32)   # scores_list

    params = dict(
        ln1_g=jnp.ones((1, D), jnp.float32),             # LayerNorm default init
        ln1_b=jnp.zeros((1, D), jnp.float32),
        w1=0.1 * jax.random.normal(k3, (D, H), jnp.float32),
        b1=0.01 * jax.random.normal(k4, (1, H), jnp.float32),
        w2=0.1 * jax.random.normal(k5, (1, H), jnp.float32),   # Linear(H,1) weight^T
        b2=0.01 * jax.random.normal(k6, (1, 1), jnp.float32),
        ln2_g=jnp.ones((1, S), jnp.float32),
        ln2_b=jnp.zeros((1, S), jnp.float32),
    )
    # TODO(synk): calculate_loss (nn.CrossEntropyLoss) is training-only glue and
    # is not part of the forward kernel.

    # block_b=8 -> 2 parallel grid steps even at this tiny demo batch
    # (keeps both v7x TensorCores busy); for real B use the default 512+.
    out = jax.block_until_ready(attention_module_forward(x, s, params, block_b=8))
    ref = reference_forward(x, s, params)

    assert out.shape == (B, S), out.shape
    assert jnp.allclose(out, ref, atol=1e-4, rtol=1e-4), float(jnp.max(jnp.abs(out - ref)))
    print("KERNEL_OK")
</pallas_src>

<mosaic_0001>
module attributes {stable_mosaic.version = 11 : i64} {
  func.func @_attention_kernel(%arg0: i32, %arg1: memref<4x8x32xf32, #tpu.memory_space<vmem>>, %arg2: memref<4x8x128xf32, #tpu.memory_space<vmem>>, %arg3: memref<1x32xf32, #tpu.memory_space<vmem>>, %arg4: memref<1x32xf32, #tpu.memory_space<vmem>>, %arg5: memref<32x16xf32, #tpu.memory_space<vmem>>, %arg6: memref<1x16xf32, #tpu.memory_space<vmem>>, %arg7: memref<1x16xf32, #tpu.memory_space<vmem>>, %arg8: memref<1x1xf32, #tpu.memory_space<smem>>, %arg9: memref<1x128xf32, #tpu.memory_space<vmem>>, %arg10: memref<1x128xf32, #tpu.memory_space<vmem>>, %arg11: memref<8x128xf32, #tpu.memory_space<vmem>>) attributes {dimension_semantics = [#tpu.dimension_semantics<parallel>], iteration_bounds = array<i64: 2>, scalar_prefetch = 0 : i64, scratch_operands = 0 : i64, tpu.core_type = #tpu.core_type<tc>, window_params = [{transform_indices = @transform_0, window_bounds = array<i64: 4, 8, 32>}, {transform_indices = @transform_1, window_bounds = array<i64: 4, 8, 128>}, {pipeline_mode = #tpu.pipeline_mode<synchronous>, transform_indices = @transform_2, window_bounds = array<i64: 1, 32>}, {pipeline_mode = #tpu.pipeline_mode<synchronous>, transform_indices = @transform_3, window_bounds = array<i64: 1, 32>}, {pipeline_mode = #tpu.pipeline_mode<synchronous>, transform_indices = @transform_4, window_bounds = array<i64: 32, 16>}, {pipeline_mode = #tpu.pipeline_mode<synchronous>, transform_indices = @transform_5, window_bounds = array<i64: 1, 16>}, {pipeline_mode = #tpu.pipeline_mode<synchronous>, transform_indices = @transform_6, window_bounds = array<i64: 1, 16>}, {transform_indices = @transform_7, window_bounds = array<i64: 1, 1>}, {pipeline_mode = #tpu.pipeline_mode<synchronous>, transform_indices = @transform_8, window_bounds = array<i64: 1, 128>}, {pipeline_mode = #tpu.pipeline_mode<synchronous>, transform_indices = @transform_9, window_bounds = array<i64: 1, 128>}, {transform_indices = @transform_10, window_bounds = array<i64: 8, 128>}]} {
    %c0 = arith.constant 0 : index
    %c0_0 = arith.constant 0 : index
    %0 = vector.load %arg3[%c0, %c0_0] : memref<1x32xf32, #tpu.memory_space<vmem>>, vector<1x32xf32>
    %c0_1 = arith.constant 0 : index
    %c0_2 = arith.constant 0 : index
    %1 = vector.load %arg4[%c0_1, %c0_2] : memref<1x32xf32, #tpu.memory_space<vmem>>, vector<1x32xf32>
    %c0_3 = arith.constant 0 : index
    %c0_4 = arith.constant 0 : index
    %2 = vector.load %arg5[%c0_3, %c0_4] : memref<32x16xf32, #tpu.memory_space<vmem>>, vector<32x16xf32>
    %c0_5 = arith.constant 0 : index
    %c0_6 = arith.constant 0 : index
    %3 = vector.load %arg6[%c0_5, %c0_6] : memref<1x16xf32, #tpu.memory_space<vmem>>, vector<1x16xf32>
    %c0_7 = arith.constant 0 : index
    %c0_8 = arith.constant 0 : index
    %4 = vector.load %arg7[%c0_7, %c0_8] : memref<1x16xf32, #tpu.memory_space<vmem>>, vector<1x16xf32>
    %c0_9 = arith.constant 0 : index
    %c0_10 = arith.constant 0 : index
    %5 = memref.load %arg8[%c0_9, %c0_10] : memref<1x1xf32, #tpu.memory_space<smem>>
    %c0_11 = arith.constant 0 : index
    %c0_12 = arith.constant 0 : index
    %6 = vector.load %arg9[%c0_11, %c0_12] : memref<1x128xf32, #tpu.memory_space<vmem>>, vector<1x128xf32>
    %c0_13 = arith.constant 0 : index
    %c0_14 = arith.constant 0 : index
    %7 = vector.load %arg10[%c0_13, %c0_14] : memref<1x128xf32, #tpu.memory_space<vmem>>, vector<1x128xf32>
    %c0_15 = arith.constant 0 : index
    %c0_16 = arith.constant 0 : index
    %c0_17 = arith.constant 0 : index
    %8 = vector.load %arg1[%c0_15, %c0_16, %c0_17] : memref<4x8x32xf32, #tpu.memory_space<vmem>>, vector<1x8x32xf32>
    %9 = vector.shape_cast %8 : vector<1x8x32xf32> to vector<8x32xf32>
    %cst = arith.constant dense<0.000000e+00> : vector<8xf32>
    %10 = vector.multi_reduction <add>, %9, %cst [1] : vector<8x32xf32> to vector<8xf32>
    %11 = vector.shape_cast %10 : vector<8xf32> to vector<8x1xf32>
    %cst_18 = arith.constant 3.200000e+01 : f32
    %12 = vector.broadcast %cst_18 : f32 to vector<8x1xf32>
    %13 = arith.divf %11, %12 : vector<8x1xf32>
    %14 = vector.broadcast %13 : vector<8x1xf32> to vector<8x32xf32>
    %15 = arith.subf %9, %14 : vector<8x32xf32>
    %16 = arith.mulf %15, %15 : vector<8x32xf32>
    %cst_19 = arith.constant dense<0.000000e+00> : vector<8xf32>
    %17 = vector.multi_reduction <add>, %16, %cst_19 [1] : vector<8x32xf32> to vector<8xf32>
    %18 = vector.shape_cast %17 : vector<8xf32> to vector<8x1xf32>
    %cst_20 = arith.constant 3.200000e+01 : f32
    %19 = vector.broadcast %cst_20 : f32 to vector<8x1xf32>
    %20 = arith.divf %18, %19 : vector<8x1xf32>
    %21 = vector.broadcast %13 : vector<8x1xf32> to vector<8x32xf32>
    %22 = arith.subf %9, %21 : vector<8x32xf32>
    %cst_21 = arith.constant 9.99999974E-6 : f32
    %23 = vector.broadcast %cst_21 : f32 to vector<8x1xf32>
    %24 = arith.addf %20, %23 : vector<8x1xf32>
    %25 = math.rsqrt %24 : vector<8x1xf32>
    %26 = vector.broadcast %25 : vector<8x1xf32> to vector<8x32xf32>
    %27 = arith.mulf %22, %26 : vector<8x32xf32>
    %28 = vector.broadcast %0 : vector<1x32xf32> to vector<8x32xf32>
    %29 = arith.mulf %27, %28 : vector<8x32xf32>
    %30 = vector.broadcast %1 : vector<1x32xf32> to vector<8x32xf32>
    %31 = arith.addf %29, %30 : vector<8x32xf32>
    %cst_22 = arith.constant dense<0.000000e+00> : vector<8x16xf32>
    %32 = tpu.matmul %31, %2, %cst_22 {dimension_numbers = #tpu.dot_dimension_numbers<[1], [0], [0], [1], [0, 0, 1, 1], [], []>} : vector<8x32xf32>, vector<32x16xf32>, vector<8x16xf32> -> vector<8x16xf32>
    %33 = vector.broadcast %3 : vector<1x16xf32> to vector<8x16xf32>
    %34 = arith.addf %32, %33 : vector<8x16xf32>
    %cst_23 = arith.constant 0.000000e+00 : f32
    %35 = vector.broadcast %cst_23 : f32 to vector<8x16xf32>
    %36 = arith.maximumf %34, %35 : vector<8x16xf32>
    %37 = vector.broadcast %4 : vector<1x16xf32> to vector<8x16xf32>
    %38 = arith.mulf %36, %37 : vector<8x16xf32>
    %cst_24 = arith.constant dense<0.000000e+00> : vector<8xf32>
    %39 = vector.multi_reduction <add>, %38, %cst_24 [1] : vector<8x16xf32> to vector<8xf32>
    %40 = vector.shape_cast %39 : vector<8xf32> to vector<8x1xf32>
    %41 = vector.broadcast %5 : f32 to vector<8x1xf32>
    %42 = arith.addf %40, %41 : vector<8x1xf32>
    %cst_25 = arith.constant 0.000000e+00 : f32
    %43 = vector.broadcast %cst_25 : f32 to vector<8x1xf32>
    %44 = arith.maximumf %42, %43 : vector<8x1xf32>
    %c1 = arith.constant 1 : index
    %c0_26 = arith.constant 0 : index
    %c0_27 = arith.constant 0 : index
    %45 = vector.load %arg1[%c1, %c0_26, %c0_27] : memref<4x8x32xf32, #tpu.memory_space<vmem>>, vector<1x8x32xf32>
    %46 = vector.shape_cast %45 : vector<1x8x32xf32> to vector<8x32xf32>
    %cst_28 = arith.constant dense<0.000000e+00> : vector<8xf32>
    %47 = vector.multi_reduction <add>, %46, %cst_28 [1] : vector<8x32xf32> to vector<8xf32>
    %48 = vector.shape_cast %47 : vector<8xf32> to vector<8x1xf32>
    %cst_29 = arith.constant 3.200000e+01 : f32
    %49 = vector.broadcast %cst_29 : f32 to vector<8x1xf32>
    %50 = arith.divf %48, %49 : vector<8x1xf32>
    %51 = vector.broadcast %50 : vector<8x1xf32> to vector<8x32xf32>
    %52 = arith.subf %46, %51 : vector<8x32xf32>
    %53 = arith.mulf %52, %52 : vector<8x32xf32>
    %cst_30 = arith.constant dense<0.000000e+00> : vector<8xf32>
    %54 = vector.multi_reduction <add>, %53, %cst_30 [1] : vector<8x32xf32> to vector<8xf32>
    %55 = vector.shape_cast %54 : vector<8xf32> to vector<8x1xf32>
    %cst_31 = arith.constant 3.200000e+01 : f32
    %56 = vector.broadcast %cst_31 : f32 to vector<8x1xf32>
    %57 = arith.divf %55, %56 : vector<8x1xf32>
    %58 = vector.broadcast %50 : vector<8x1xf32> to vector<8x32xf32>
    %59 = arith.subf %46, %58 : vector<8x32xf32>
    %cst_32 = arith.constant 9.99999974E-6 : f32
    %60 = vector.broadcast %cst_32 : f32 to vector<8x1xf32>
    %61 = arith.addf %57, %60 : vector<8x1xf32>
    %62 = math.rsqrt %61 : vector<8x1xf32>
    %63 = vector.broadcast %62 : vector<8x1xf32> to vector<8x32xf32>
    %64 = arith.mulf %59, %63 : vector<8x32xf32>
    %65 = vector.broadcast %0 : vector<1x32xf32> to vector<8x32xf32>
    %66 = arith.mulf %64, %65 : vector<8x32xf32>
    %67 = vector.broadcast %1 : vector<1x32xf32> to vector<8x32xf32>
    %68 = arith.addf %66, %67 : vector<8x32xf32>
    %cst_33 = arith.constant dense<0.000000e+00> : vector<8x16xf32>
    %69 = tpu.matmul %68, %2, %cst_33 {dimension_numbers = #tpu.dot_dimension_numbers<[1], [0], [0], [1], [0, 0, 1, 1], [], []>} : vector<8x32xf32>, vector<32x16xf32>, vector<8x16xf32> -> vector<8x16xf32>
    %70 = vector.broadcast %3 : vector<1x16xf32> to vector<8x16xf32>
    %71 = arith.addf %69, %70 : vector<8x16xf32>
    %cst_34 = arith.constant 0.000000e+00 : f32
    %72 = vector.broadcast %cst_34 : f32 to vector<8x16xf32>
    %73 = arith.maximumf %71, %72 : vector<8x16xf32>
    %74 = vector.broadcast %4 : vector<1x16xf32> to vector<8x16xf32>
    %75 = arith.mulf %73, %74 : vector<8x16xf32>
    %cst_35 = arith.constant dense<0.000000e+00> : vector<8xf32>
    %76 = vector.multi_reduction <add>, %75, %cst_35 [1] : vector<8x16xf32> to vector<8xf32>
    %77 = vector.shape_cast %76 : vector<8xf32> to vector<8x1xf32>
    %78 = vector.broadcast %5 : f32 to vector<8x1xf32>
    %79 = arith.addf %77, %78 : vector<8x1xf32>
    %cst_36 = arith.constant 0.000000e+00 : f32
    %80 = vector.broadcast %cst_36 : f32 to vector<8x1xf32>
    %81 = arith.maximumf %79, %80 : vector<8x1xf32>
    %c2 = arith.constant 2 : index
    %c0_37 = arith.constant 0 : index
    %c0_38 = arith.constant 0 : index
    %82 = vector.load %arg1[%c2, %c0_37, %c0_38] : memref<4x8x32xf32, #tpu.memory_space<vmem>>, vector<1x8x32xf32>
    %83 = vector.shape_cast %82 : vector<1x8x32xf32> to vector<8x32xf32>
    %cst_39 = arith.constant dense<0.000000e+00> : vector<8xf32>
    %84 = vector.multi_reduction <add>, %83, %cst_39 [1] : vector<8x32xf32> to vector<8xf32>
    %85 = vector.shape_cast %84 : vector<8xf32> to vector<8x1xf32>
    %cst_40 = arith.constant 3.200000e+01 : f32
    %86 = vector.broadcast %cst_40 : f32 to vector<8x1xf32>
    %87 = arith.divf %85, %86 : vector<8x1xf32>
    %88 = vector.broadcast %87 : vector<8x1xf32> to vector<8x32xf32>
    %89 = arith.subf %83, %88 : vector<8x32xf32>
    %90 = arith.mulf %89, %89 : vector<8x32xf32>
    %cst_41 = arith.constant dense<0.000000e+00> : vector<8xf32>
    %91 = vector.multi_reduction <add>, %90, %cst_41 [1] : vector<8x32xf32> to vector<8xf32>
    %92 = vector.shape_cast %91 : vector<8xf32> to vector<8x1xf32>
    %cst_42 = arith.constant 3.200000e+01 : f32
    %93 = vector.broadcast %cst_42 : f32 to vector<8x1xf32>
    %94 = arith.divf %92, %93 : vector<8x1xf32>
    %95 = vector.broadcast %87 : vector<8x1xf32> to vector<8x32xf32>
    %96 = arith.subf %83, %95 : vector<8x32xf32>
    %cst_43 = arith.constant 9.99999974E-6 : f32
    %97 = vector.broadcast %cst_43 : f32 to vector<8x1xf32>
    %98 = arith.addf %94, %97 : vector<8x1xf32>
    %99 = math.rsqrt %98 : vector<8x1xf32>
    %100 = vector.broadcast %99 : vector<8x1xf32> to vector<8x32xf32>
    %101 = arith.mulf %96, %100 : vector<8x32xf32>
    %102 = vector.broadcast %0 : vector<1x32xf32> to vector<8x32xf32>
    %103 = arith.mulf %101, %102 : vector<8x32xf32>
    %104 = vector.broadcast %1 : vector<1x32xf32> to vector<8x32xf32>
    %105 = arith.addf %103, %104 : vector<8x32xf32>
    %cst_44 = arith.constant dense<0.000000e+00> : vector<8x16xf32>
    %106 = tpu.matmul %105, %2, %cst_44 {dimension_numbers = #tpu.dot_dimension_numbers<[1], [0], [0], [1], [0, 0, 1, 1], [], []>} : vector<8x32xf32>, vector<32x16xf32>, vector<8x16xf32> -> vector<8x16xf32>
    %107 = vector.broadcast %3 : vector<1x16xf32> to vector<8x16xf32>
    %108 = arith.addf %106, %107 : vector<8x16xf32>
    %cst_45 = arith.constant 0.000000e+00 : f32
    %109 = vector.broadcast %cst_45 : f32 to vector<8x16xf32>
    %110 = arith.maximumf %108, %109 : vector<8x16xf32>
    %111 = vector.broadcast %4 : vector<1x16xf32> to vector<8x16xf32>
    %112 = arith.mulf %110, %111 : vector<8x16xf32>
    %cst_46 = arith.constant dense<0.000000e+00> : vector<8xf32>
    %113 = vector.multi_reduction <add>, %112, %cst_46 [1] : vector<8x16xf32> to vector<8xf32>
    %114 = vector.shape_cast %113 : vector<8xf32> to vector<8x1xf32>
    %115 = vector.broadcast %5 : f32 to vector<8x1xf32>
    %116 = arith.addf %114, %115 : vector<8x1xf32>
    %cst_47 = arith.constant 0.000000e+00 : f32
    %117 = vector.broadcast %cst_47 : f32 to vector<8x1xf32>
    %118 = arith.maximumf %116, %117 : vector<8x1xf32>
    %c3 = arith.constant 3 : index
    %c0_48 = arith.constant 0 : index
    %c0_49 = arith.constant 0 : index
    %119 = vector.load %arg1[%c3, %c0_48, %c0_49] : memref<4x8x32xf32, #tpu.memory_space<vmem>>, vector<1x8x32xf32>
    %120 = vector.shape_cast %119 : vector<1x8x32xf32> to vector<8x32xf32>
    %cst_50 = arith.constant dense<0.000000e+00> : vector<8xf32>
    %121 = vector.multi_reduction <add>, %120, %cst_50 [1] : vector<8x32xf32> to vector<8xf32>
    %122 = vector.shape_cast %121 : vector<8xf32> to vector<8x1xf32>
    %cst_51 = arith.constant 3.200000e+01 : f32
    %123 = vector.broadcast %cst_51 : f32 to vector<8x1xf32>
    %124 = arith.divf %122, %123 : vector<8x1xf32>
    %125 = vector.broadcast %124 : vector<8x1xf32> to vector<8x32xf32>
    %126 = arith.subf %120, %125 : vector<8x32xf32>
    %127 = arith.mulf %126, %126 : vector<8x32xf32>
    %cst_52 = arith.constant dense<0.000000e+00> : vector<8xf32>
    %128 = vector.multi_reduction <add>, %127, %cst_52 [1] : vector<8x32xf32> to vector<8xf32>
    %129 = vector.shape_cast %128 : vector<8xf32> to vector<8x1xf32>
    %cst_53 = arith.constant 3.200000e+01 : f32
    %130 = vector.broadcast %cst_53 : f32 to vector<8x1xf32>
    %131 = arith.divf %129, %130 : vector<8x1xf32>
    %132 = vector.broadcast %124 : vector<8x1xf32> to vector<8x32xf32>
    %133 = arith.subf %120, %132 : vector<8x32xf32>
    %cst_54 = arith.constant 9.99999974E-6 : f32
    %134 = vector.broadcast %cst_54 : f32 to vector<8x1xf32>
    %135 = arith.addf %131, %134 : vector<8x1xf32>
    %136 = math.rsqrt %135 : vector<8x1xf32>
    %137 = vector.broadcast %136 : vector<8x1xf32> to vector<8x32xf32>
    %138 = arith.mulf %133, %137 : vector<8x32xf32>
    %139 = vector.broadcast %0 : vector<1x32xf32> to vector<8x32xf32>
    %140 = arith.mulf %138, %139 : vector<8x32xf32>
    %141 = vector.broadcast %1 : vector<1x32xf32> to vector<8x32xf32>
    %142 = arith.addf %140, %141 : vector<8x32xf32>
    %cst_55 = arith.constant dense<0.000000e+00> : vector<8x16xf32>
    %143 = tpu.matmul %142, %2, %cst_55 {dimension_numbers = #tpu.dot_dimension_numbers<[1], [0], [0], [1], [0, 0, 1, 1], [], []>} : vector<8x32xf32>, vector<32x16xf32>, vector<8x16xf32> -> vector<8x16xf32>
    %144 = vector.broadcast %3 : vector<1x16xf32> to vector<8x16xf32>
    %145 = arith.addf %143, %144 : vector<8x16xf32>
    %cst_56 = arith.constant 0.000000e+00 : f32
    %146 = vector.broadcast %cst_56 : f32 to vector<8x16xf32>
    %147 = arith.maximumf %145, %146 : vector<8x16xf32>
    %148 = vector.broadcast %4 : vector<1x16xf32> to vector<8x16xf32>
    %149 = arith.mulf %147, %148 : vector<8x16xf32>
    %cst_57 = arith.constant dense<0.000000e+00> : vector<8xf32>
    %150 = vector.multi_reduction <add>, %149, %cst_57 [1] : vector<8x16xf32> to vector<8xf32>
    %151 = vector.shape_cast %150 : vector<8xf32> to vector<8x1xf32>
    %152 = vector.broadcast %5 : f32 to vector<8x1xf32>
    %153 = arith.addf %151, %152 : vector<8x1xf32>
    %cst_58 = arith.constant 0.000000e+00 : f32
    %154 = vector.broadcast %cst_58 : f32 to vector<8x1xf32>
    %155 = arith.maximumf %153, %154 : vector<8x1xf32>
    %156 = arith.maximumf %44, %81 : vector<8x1xf32>
    %157 = arith.maximumf %156, %118 : vector<8x1xf32>
    %158 = arith.maximumf %157, %155 : vector<8x1xf32>
    %159 = arith.subf %44, %158 : vector<8x1xf32>
    %160 = math.exp %159 : vector<8x1xf32>
    %161 = arith.subf %81, %158 : vector<8x1xf32>
    %162 = math.exp %161 : vector<8x1xf32>
    %163 = arith.subf %118, %158 : vector<8x1xf32>
    %164 = math.exp %163 : vector<8x1xf32>
    %165 = arith.subf %155, %158 : vector<8x1xf32>
    %166 = math.exp %165 : vector<8x1xf32>
    %167 = arith.addf %160, %162 : vector<8x1xf32>
    %168 = arith.addf %167, %164 : vector<8x1xf32>
    %169 = arith.addf %168, %166 : vector<8x1xf32>
    %cst_59 = arith.constant 1.000000e+00 : f32
    %170 = vector.broadcast %cst_59 : f32 to vector<8x1xf32>
    %171 = arith.divf %170, %169 : vector<8x1xf32>
    %c0_60 = arith.constant 0 : index
    %c0_61 = arith.constant 0 : index
    %c0_62 = arith.constant 0 : index
    %172 = vector.load %arg2[%c0_60, %c0_61, %c0_62] : memref<4x8x128xf32, #tpu.memory_space<vmem>>, vector<1x8x128xf32>
    %173 = vector.shape_cast %172 : vector<1x8x128xf32> to vector<8x128xf32>
    %cst_63 = arith.constant dense<0.000000e+00> : vector<8xf32>
    %174 = vector.multi_reduction <add>, %173, %cst_63 [1] : vector<8x128xf32> to vector<8xf32>
    %175 = vector.shape_cast %174 : vector<8xf32> to vector<8x1xf32>
    %cst_64 = arith.constant 1.280000e+02 : f32
    %176 = vector.broadcast %cst_64 : f32 to vector<8x1xf32>
    %177 = arith.divf %175, %176 : vector<8x1xf32>
    %178 = vector.broadcast %177 : vector<8x1xf32> to vector<8x128xf32>
    %179 = arith.subf %173, %178 : vector<8x128xf32>
    %180 = arith.mulf %179, %179 : vector<8x128xf32>
    %cst_65 = arith.constant dense<0.000000e+00> : vector<8xf32>
    %181 = vector.multi_reduction <add>, %180, %cst_65 [1] : vector<8x128xf32> to vector<8xf32>
    %182 = vector.shape_cast %181 : vector<8xf32> to vector<8x1xf32>
    %cst_66 = arith.constant 1.280000e+02 : f32
    %183 = vector.broadcast %cst_66 : f32 to vector<8x1xf32>
    %184 = arith.divf %182, %183 : vector<8x1xf32>
    %185 = vector.broadcast %177 : vector<8x1xf32> to vector<8x128xf32>
    %186 = arith.subf %173, %185 : vector<8x128xf32>
    %cst_67 = arith.constant 9.99999974E-6 : f32
    %187 = vector.broadcast %cst_67 : f32 to vector<8x1xf32>
    %188 = arith.addf %184, %187 : vector<8x1xf32>
    %189 = math.rsqrt %188 : vector<8x1xf32>
    %190 = vector.broadcast %189 : vector<8x1xf32> to vector<8x128xf32>
    %191 = arith.mulf %186, %190 : vector<8x128xf32>
    %192 = vector.broadcast %6 : vector<1x128xf32> to vector<8x128xf32>
    %193 = arith.mulf %191, %192 : vector<8x128xf32>
    %194 = vector.broadcast %7 : vector<1x128xf32> to vector<8x128xf32>
    %195 = arith.addf %193, %194 : vector<8x128xf32>
    %196 = arith.mulf %160, %171 : vector<8x1xf32>
    %197 = vector.broadcast %196 : vector<8x1xf32> to vector<8x128xf32>
    %198 = arith.mulf %197, %195 : vector<8x128xf32>
    %c1_68 = arith.constant 1 : index
    %c0_69 = arith.constant 0 : index
    %c0_70 = arith.constant 0 : index
    %199 = vector.load %arg2[%c1_68, %c0_69, %c0_70] : memref<4x8x128xf32, #tpu.memory_space<vmem>>, vector<1x8x128xf32>
    %200 = vector.shape_cast %199 : vector<1x8x128xf32> to vector<8x128xf32>
    %cst_71 = arith.constant dense<0.000000e+00> : vector<8xf32>
    %201 = vector.multi_reduction <add>, %200, %cst_71 [1] : vector<8x128xf32> to vector<8xf32>
    %202 = vector.shape_cast %201 : vector<8xf32> to vector<8x1xf32>
    %cst_72 = arith.constant 1.280000e+02 : f32
    %203 = vector.broadcast %cst_72 : f32 to vector<8x1xf32>
    %204 = arith.divf %202, %203 : vector<8x1xf32>
    %205 = vector.broadcast %204 : vector<8x1xf32> to vector<8x128xf32>
    %206 = arith.subf %200, %205 : vector<8x128xf32>
    %207 = arith.mulf %206, %206 : vector<8x128xf32>
    %cst_73 = arith.constant dense<0.000000e+00> : vector<8xf32>
    %208 = vector.multi_reduction <add>, %207, %cst_73 [1] : vector<8x128xf32> to vector<8xf32>
    %209 = vector.shape_cast %208 : vector<8xf32> to vector<8x1xf32>
    %cst_74 = arith.constant 1.280000e+02 : f32
    %210 = vector.broadcast %cst_74 : f32 to vector<8x1xf32>
    %211 = arith.divf %209, %210 : vector<8x1xf32>
    %212 = vector.broadcast %204 : vector<8x1xf32> to vector<8x128xf32>
    %213 = arith.subf %200, %212 : vector<8x128xf32>
    %cst_75 = arith.constant 9.99999974E-6 : f32
    %214 = vector.broadcast %cst_75 : f32 to vector<8x1xf32>
    %215 = arith.addf %211, %214 : vector<8x1xf32>
    %216 = math.rsqrt %215 : vector<8x1xf32>
    %217 = vector.broadcast %216 : vector<8x1xf32> to vector<8x128xf32>
    %218 = arith.mulf %213, %217 : vector<8x128xf32>
    %219 = vector.broadcast %6 : vector<1x128xf32> to vector<8x128xf32>
    %220 = arith.mulf %218, %219 : vector<8x128xf32>
    %221 = vector.broadcast %7 : vector<1x128xf32> to vector<8x128xf32>
    %222 = arith.addf %220, %221 : vector<8x128xf32>
    %223 = arith.mulf %162, %171 : vector<8x1xf32>
    %224 = vector.broadcast %223 : vector<8x1xf32> to vector<8x128xf32>
    %225 = arith.mulf %224, %222 : vector<8x128xf32>
    %226 = arith.addf %198, %225 : vector<8x128xf32>
    %c2_76 = arith.constant 2 : index
    %c0_77 = arith.constant 0 : index
    %c0_78 = arith.constant 0 : index
    %227 = vector.load %arg2[%c2_76, %c0_77, %c0_78] : memref<4x8x128xf32, #tpu.memory_space<vmem>>, vector<1x8x128xf32>
    %228 = vector.shape_cast %227 : vector<1x8x128xf32> to vector<8x128xf32>
    %cst_79 = arith.constant dense<0.000000e+00> : vector<8xf32>
    %229 = vector.multi_reduction <add>, %228, %cst_79 [1] : vector<8x128xf32> to vector<8xf32>
    %230 = vector.shape_cast %229 : vector<8xf32> to vector<8x1xf32>
    %cst_80 = arith.constant 1.280000e+02 : f32
    %231 = vector.broadcast %cst_80 : f32 to vector<8x1xf32>
    %232 = arith.divf %230, %231 : vector<8x1xf32>
    %233 = vector.broadcast %232 : vector<8x1xf32> to vector<8x128xf32>
    %234 = arith.subf %228, %233 : vector<8x128xf32>
    %235 = arith.mulf %234, %234 : vector<8x128xf32>
    %cst_81 = arith.constant dense<0.000000e+00> : vector<8xf32>
    %236 = vector.multi_reduction <add>, %235, %cst_81 [1] : vector<8x128xf32> to vector<8xf32>
    %237 = vector.shape_cast %236 : vector<8xf32> to vector<8x1xf32>
    %cst_82 = arith.constant 1.280000e+02 : f32
    %238 = vector.broadcast %cst_82 : f32 to vector<8x1xf32>
    %239 = arith.divf %237, %238 : vector<8x1xf32>
    %240 = vector.broadcast %232 : vector<8x1xf32> to vector<8x128xf32>
    %241 = arith.subf %228, %240 : vector<8x128xf32>
    %cst_83 = arith.constant 9.99999974E-6 : f32
    %242 = vector.broadcast %cst_83 : f32 to vector<8x1xf32>
    %243 = arith.addf %239, %242 : vector<8x1xf32>
    %244 = math.rsqrt %243 : vector<8x1xf32>
    %245 = vector.broadcast %244 : vector<8x1xf32> to vector<8x128xf32>
    %246 = arith.mulf %241, %245 : vector<8x128xf32>
    %247 = vector.broadcast %6 : vector<1x128xf32> to vector<8x128xf32>
    %248 = arith.mulf %246, %247 : vector<8x128xf32>
    %249 = vector.broadcast %7 : vector<1x128xf32> to vector<8x128xf32>
    %250 = arith.addf %248, %249 : vector<8x128xf32>
    %251 = arith.mulf %164, %171 : vector<8x1xf32>
    %252 = vector.broadcast %251 : vector<8x1xf32> to vector<8x128xf32>
    %253 = arith.mulf %252, %250 : vector<8x128xf32>
    %254 = arith.addf %226, %253 : vector<8x128xf32>
    %c3_84 = arith.constant 3 : index
    %c0_85 = arith.constant 0 : index
    %c0_86 = arith.constant 0 : index
    %255 = vector.load %arg2[%c3_84, %c0_85, %c0_86] : memref<4x8x128xf32, #tpu.memory_space<vmem>>, vector<1x8x128xf32>
    %256 = vector.shape_cast %255 : vector<1x8x128xf32> to vector<8x128xf32>
    %cst_87 = arith.constant dense<0.000000e+00> : vector<8xf32>
    %257 = vector.multi_reduction <add>, %256, %cst_87 [1] : vector<8x128xf32> to vector<8xf32>
    %258 = vector.shape_cast %257 : vector<8xf32> to vector<8x1xf32>
    %cst_88 = arith.constant 1.280000e+02 : f32
    %259 = vector.broadcast %cst_88 : f32 to vector<8x1xf32>
    %260 = arith.divf %258, %259 : vector<8x1xf32>
    %261 = vector.broadcast %260 : vector<8x1xf32> to vector<8x128xf32>
    %262 = arith.subf %256, %261 : vector<8x128xf32>
    %263 = arith.mulf %262, %262 : vector<8x128xf32>
    %cst_89 = arith.constant dense<0.000000e+00> : vector<8xf32>
    %264 = vector.multi_reduction <add>, %263, %cst_89 [1] : vector<8x128xf32> to vector<8xf32>
    %265 = vector.shape_cast %264 : vector<8xf32> to vector<8x1xf32>
    %cst_90 = arith.constant 1.280000e+02 : f32
    %266 = vector.broadcast %cst_90 : f32 to vector<8x1xf32>
    %267 = arith.divf %265, %266 : vector<8x1xf32>
    %268 = vector.broadcast %260 : vector<8x1xf32> to vector<8x128xf32>
    %269 = arith.subf %256, %268 : vector<8x128xf32>
    %cst_91 = arith.constant 9.99999974E-6 : f32
    %270 = vector.broadcast %cst_91 : f32 to vector<8x1xf32>
    %271 = arith.addf %267, %270 : vector<8x1xf32>
    %272 = math.rsqrt %271 : vector<8x1xf32>
    %273 = vector.broadcast %272 : vector<8x1xf32> to vector<8x128xf32>
    %274 = arith.mulf %269, %273 : vector<8x128xf32>
    %275 = vector.broadcast %6 : vector<1x128xf32> to vector<8x128xf32>
    %276 = arith.mulf %274, %275 : vector<8x128xf32>
    %277 = vector.broadcast %7 : vector<1x128xf32> to vector<8x128xf32>
    %278 = arith.addf %276, %277 : vector<8x128xf32>
    %279 = arith.mulf %166, %171 : vector<8x1xf32>
    %280 = vector.broadcast %279 : vector<8x1xf32> to vector<8x128xf32>
    %281 = arith.mulf %280, %278 : vector<8x128xf32>
    %282 = arith.addf %254, %281 : vector<8x128xf32>
    %c0_92 = arith.constant 0 : index
    %c0_93 = arith.constant 0 : index
    %283 = vector.load %arg11[%c0_92, %c0_93] : memref<8x128xf32, #tpu.memory_space<vmem>>, vector<8x128xf32>
    tpu.vector_store %arg11[%c0_92, %c0_93], %282 {strides = array<i32>} : memref<8x128xf32, #tpu.memory_space<vmem>>, vector<8x128xf32>,
    return
  }
  func.func @transform_0(%arg0: i32) -> (i32, i32, i32) {
    %c0_i32 = arith.constant 0 : i32
    %c0_i32_0 = arith.constant 0 : i32
    %c0_i32_1 = arith.constant 0 : i32
    return %c0_i32, %arg0, %c0_i32_0 : i32, i32, i32
  }
  func.func @transform_1(%arg0: i32) -> (i32, i32, i32) {
    %c0_i32 = arith.constant 0 : i32
    %c0_i32_0 = arith.constant 0 : i32
    %c0_i32_1 = arith.constant 0 : i32
    return %c0_i32, %arg0, %c0_i32_0 : i32, i32, i32
  }
  func.func @transform_2(%arg0: i32) -> (i32, i32) {
    %c0_i32 = arith.constant 0 : i32
    %c0_i32_0 = arith.constant 0 : i32
    %c0_i32_1 = arith.constant 0 : i32
    return %c0_i32, %c0_i32_0 : i32, i32
  }
  func.func @transform_3(%arg0: i32) -> (i32, i32) {
    %c0_i32 = arith.constant 0 : i32
    %c0_i32_0 = arith.constant 0 : i32
    %c0_i32_1 = arith.constant 0 : i32
    return %c0_i32, %c0_i32_0 : i32, i32
  }
  func.func @transform_4(%arg0: i32) -> (i32, i32) {
    %c0_i32 = arith.constant 0 : i32
    %c0_i32_0 = arith.constant 0 : i32
    %c0_i32_1 = arith.constant 0 : i32
    return %c0_i32, %c0_i32_0 : i32, i32
  }
  func.func @transform_5(%arg0: i32) -> (i32, i32) {
    %c0_i32 = arith.constant 0 : i32
    %c0_i32_0 = arith.constant 0 : i32
    %c0_i32_1 = arith.constant 0 : i32
    return %c0_i32, %c0_i32_0 : i32, i32
  }
  func.func @transform_6(%arg0: i32) -> (i32, i32) {
    %c0_i32 = arith.constant 0 : i32
    %c0_i32_0 = arith.constant 0 : i32
    %c0_i32_1 = arith.constant 0 : i32
    return %c0_i32, %c0_i32_0 : i32, i32
  }
  func.func @transform_7(%arg0: i32) -> (i32, i32) {
    %c0_i32 = arith.constant 0 : i32
    %c0_i32_0 = arith.constant 0 : i32
    %c0_i32_1 = arith.constant 0 : i32
    return %c0_i32, %c0_i32_0 : i32, i32
  }
  func.func @transform_8(%arg0: i32) -> (i32, i32) {
    %c0_i32 = arith.constant 0 : i32
    %c0_i32_0 = arith.constant 0 : i32
    %c0_i32_1 = arith.constant 0 : i32
    return %c0_i32, %c0_i32_0 : i32, i32
  }
  func.func @transform_9(%arg0: i32) -> (i32, i32) {
    %c0_i32 = arith.constant 0 : i32
    %c0_i32_0 = arith.constant 0 : i32
    %c0_i32_1 = arith.constant 0 : i32
    return %c0_i32, %c0_i32_0 : i32, i32
  }
  func.func @transform_10(%arg0: i32) -> (i32, i32) {
    %c0_i32 = arith.constant 0 : i32
    %c0_i32_0 = arith.constant 0 : i32
    return %arg0, %c0_i32 : i32, i32
  }
}

</mosaic_0001>

<llo_original>
// kernel: tpu_custom_call.1
$region0: #{tpu_custom_call.1}
  #allocation0 [shape = 'u32[]', space=smem, size = 0x4, offset = 0x4, fixed_abs, tag = 'smem constant byte address 0x4 - core index']
  #allocation1 [shape = 'u32[72,128]{1,0:T(1,128)}', space=vmem, size = 0x9000, scoped, tag = 'internal scratch']
  #allocation2 [shape = 'f32[1,1]{1,0:T(1,128)S(6)}', space=smem, size = 0x200, scoped, tag = 'scoped memory for tpu_custom_call.1']
  %s0 = inlined_call_operand.hbm [shape: f32[4,16,32], index: 0, kind: input, shape index: {}]
  %s1 = inlined_call_operand.hbm [shape: f32[4,16,128], index: 1, kind: input, shape index: {}]
  %s2 = inlined_call_operand.vmem [shape: f32[1,32], index: 2, kind: input, shape index: {}]
  %s3 = inlined_call_operand.vmem [shape: f32[1,32], index: 3, kind: input, shape index: {}]
  %s4 = inlined_call_operand.vmem [shape: f32[32,16], index: 4, kind: input, shape index: {}]
  %s5 = inlined_call_operand.vmem [shape: f32[1,16], index: 5, kind: input, shape index: {}]
  %s6 = inlined_call_operand.vmem [shape: f32[1,16], index: 6, kind: input, shape index: {}]
  %s7 = inlined_call_operand.<no memory space> [shape: f32[1,1], index: 7, kind: input, shape index: {}]
  %s8 = inlined_call_operand.vmem [shape: f32[1,128], index: 8, kind: input, shape index: {}]
  %s9 = inlined_call_operand.vmem [shape: f32[1,128], index: 9, kind: input, shape index: {}]
  %s10 = inlined_call_operand.hbm [shape: f32[16,128], index: 10, kind: output, shape index: {}]
  %s11 = sld [smem:[#allocation0]]
  $region81: #{tpu_custom_call.1} parent=0
    _
  %s13 = ssub.s32 1, %s11
  %s14 = scalar_select 0, %s13, %s11
  %15 = sst [smem:[#allocation2]] %s7
  $region1: #{tpu_custom_call.1} parent=0
    #allocation3 [shape = 'u8[32768]{0}', space=vmem, size = 0x8000, scoped, tag = 'input window, operand 0']
    #allocation4 [shape = 's32[2]{0}', space=sflag, size = 0x8, scoped, tag = 'scoped memory for tpu_custom_call.1']
    #allocation5 [shape = 's32[2]{0}', space=sflag, size = 0x8, scoped, tag = 'scoped memory for tpu_custom_call.1']
    #allocation6 [shape = 'u8[32768]{0}', space=vmem, size = 0x8000, scoped, tag = 'input window, operand 1']
    #allocation7 [shape = 's32[2]{0}', space=sflag, size = 0x8, scoped, tag = 'scoped memory for tpu_custom_call.1']
    #allocation8 [shape = 'u8[8192]{0}', space=vmem, size = 0x2000, scoped, tag = 'output window, operand 0']
    %16 = vsyncpa [#allocation4], 0
    %s17 = scalar_lea.sflag [#allocation4], 1
    %18 = vsyncpa %s17, 0
    %19 = vsyncpa [#allocation7], 0
    %s20 = scalar_lea.sflag [#allocation7], 1
    %21 = vsyncpa %s20, 0
    %22 = vsyncpa [#allocation5], 0
    %s23 = scalar_lea.sflag [#allocation5], 1
    %24 = vsyncpa %s23, 0
    loop: start=0, step=1, limit=4
    $region2: #{tpu_custom_call.1} parent=1 // loop_pre_header
      _
    $region3: #{tpu_custom_call.1} parent=1 // loop_header
      %s26 = sphi 0, %s30
      %p27 = scmp.ge.s32.totalorder %s26, 4
      %s36 = sphi 0, %s38
      %s39 = sphi 0, %s36
      %s40 = sphi 0, %s39
      %s56 = sphi 0, %s40
      %s62 = sphi 0, %s64
      %s65 = sphi 0, %s62
      %s66 = sphi 0, %s65
      %s82 = sphi 0, %s66
      %s86 = sphi 0, %s86
      %s88 = sphi 0, %s86
      %s89 = sphi 0, %s88
      %s103 = sphi 0, %s89
      %s107 = sphi 0, %s107
      %s109 = sphi 0, %s107
      %s110 = sphi 0, %s109
      %s124 = sphi 0, %s110
      %s128 = sphi 0, %s128
      %s130 = sphi 0, %s128
      %s131 = sphi 0, %s130
      %s145 = sphi 0, %s131
      %s149 = sphi 0, %s149
      %s151 = sphi 0, %s149
      %s152 = sphi 0, %s151
      %s166 = sphi 0, %s152
      %s170 = sphi 0, %s170
      %s172 = sphi 0, %s170
      %s173 = sphi 0, %s172
      %s187 = sphi 0, %s173
      %s191 = sphi 0, %s191
      %s193 = sphi 0, %s191
      %s194 = sphi 0, %s193
      %s208 = sphi 0, %s194
      %s212 = sphi 0, %s212
      %s214 = sphi 0, %s212
      %s215 = sphi 0, %s214
      %s229 = sphi 0, %s215
      %s233 = sphi 0, %s233
      %s235 = sphi 0, %s233
      %s236 = sphi 0, %s235
      %s250 = sphi 0, %s236
      %s256 = sphi 0, %s258
      %s259 = sphi 0, %s256
      %s260 = sphi 0, %s259
      %s276 = sphi 0, %s260
    $region4: #{tpu_custom_call.1} parent=1 // loop_header_branch
      %29 = sbr.rel (%p27) target = $region8
    $region5: #{tpu_custom_call.1} parent=1 // loop_body
      %s31 = ssub.s32 %s26, 1
      %s32 = ssub.s32 %s26, 2
      %s33 = sadd.s32 %s26, 1
      %s34 = ssub.s32 %s26, %s33
      %p35 = scmp.eq.s32.totalorder %s34, 0
      %s37 = sadd.s32 %s36, 1
      %s38 = scalar_select %p35, %s36, %s37
      %p41 = pneg %p35
      %p42 = scmp.eq.s32.totalorder %s26, 1
      %p43 = por %p41, %p42
      %p44 = scmp.ne.s32.totalorder %s36, %s39
      %p45 = scmp.eq.s32.totalorder %s26, 0
      %p46 = por %p44, %p45
      %p47 = scmp.ne.s32.totalorder %s36, %s39
      %p48 = scmp.eq.s32.totalorder %s31, 1
      %p49 = por %p47, %p48
      %p50 = scmp.ne.s32.totalorder %s39, %s40
      %p51 = scmp.eq.s32.totalorder %s31, 0
      %p52 = por %p50, %p51
      %p53 = scmp.ne.s32.totalorder %s39, %s40
      %p54 = scmp.eq.s32.totalorder %s32, 1
      %p55 = por %p53, %p54
      %p57 = scmp.ne.s32.totalorder %s40, %s56
      %p58 = scmp.eq.s32.totalorder %s32, 0
      %p59 = por %p57, %p58
      %s60 = ssub.s32 %s26, %s33
      %p61 = scmp.eq.s32.totalorder %s60, 0
      %s63 = sadd.s32 %s62, 1
      %s64 = scalar_select %p61, %s62, %s63
      %p67 = pneg %p61
      %p68 = scmp.eq.s32.totalorder %s26, 1
      %p69 = por %p67, %p68
      %p70 = scmp.ne.s32.totalorder %s62, %s65
      %p71 = scmp.eq.s32.totalorder %s26, 0
      %p72 = por %p70, %p71
      %p73 = scmp.ne.s32.totalorder %s62, %s65
      %p74 = scmp.eq.s32.totalorder %s31, 1
      %p75 = por %p73, %p74
      %p76 = scmp.ne.s32.totalorder %s65, %s66
      %p77 = scmp.eq.s32.totalorder %s31, 0
      %p78 = por %p76, %p77
      %p79 = scmp.ne.s32.totalorder %s65, %s66
      %p80 = scmp.eq.s32.totalorder %s32, 1
      %p81 = por %p79, %p80
      %p83 = scmp.ne.s32.totalorder %s66, %s82
      %p84 = scmp.eq.s32.totalorder %s32, 0
      %p85 = por %p83, %p84
      %s87 = sadd.s32 %s86, 1
      %p90 = scmp.eq.s32.totalorder %s26, 1
      %p91 = scmp.ne.s32.totalorder %s86, %s88
      %p92 = scmp.eq.s32.totalorder %s26, 0
      %p93 = por %p91, %p92
      %p94 = scmp.ne.s32.totalorder %s86, %s88
      %p95 = scmp.eq.s32.totalorder %s31, 1
      %p96 = por %p94, %p95
      %p97 = scmp.ne.s32.totalorder %s88, %s89
      %p98 = scmp.eq.s32.totalorder %s31, 0
      %p99 = por %p97, %p98
      %p100 = scmp.ne.s32.totalorder %s88, %s89
      %p101 = scmp.eq.s32.totalorder %s32, 1
      %p102 = por %p100, %p101
      %p104 = scmp.ne.s32.totalorder %s89, %s103
      %p105 = scmp.eq.s32.totalorder %s32, 0
      %p106 = por %p104, %p105
      %s108 = sadd.s32 %s107, 1
      %p111 = scmp.eq.s32.totalorder %s26, 1
      %p112 = scmp.ne.s32.totalorder %s107, %s109
      %p113 = scmp.eq.s32.totalorder %s26, 0
      %p114 = por %p112, %p113
      %p115 = scmp.ne.s32.totalorder %s107, %s109
      %p116 = scmp.eq.s32.totalorder %s31, 1
      %p117 = por %p115, %p116
      %p118 = scmp.ne.s32.totalorder %s109, %s110
      %p119 = scmp.eq.s32.totalorder %s31, 0
      %p120 = por %p118, %p119
      %p121 = scmp.ne.s32.totalorder %s109, %s110
      %p122 = scmp.eq.s32.totalorder %s32, 1
      %p123 = por %p121, %p122
      %p125 = scmp.ne.s32.totalorder %s110, %s124
      %p126 = scmp.eq.s32.totalorder %s32, 0
      %p127 = por %p125, %p126
      %s129 = sadd.s32 %s128, 1
      %p132 = scmp.eq.s32.totalorder %s26, 1
      %p133 = scmp.ne.s32.totalorder %s128, %s130
      %p134 = scmp.eq.s32.totalorder %s26, 0
      %p135 = por %p133, %p134
      %p136 = scmp.ne.s32.totalorder %s128, %s130
      %p137 = scmp.eq.s32.totalorder %s31, 1
      %p138 = por %p136, %p137
      %p139 = scmp.ne.s32.totalorder %s130, %s131
      %p140 = scmp.eq.s32.totalorder %s31, 0
      %p141 = por %p139, %p140
      %p142 = scmp.ne.s32.totalorder %s130, %s131
      %p143 = scmp.eq.s32.totalorder %s32, 1
      %p144 = por %p142, %p143
      %p146 = scmp.ne.s32.totalorder %s131, %s145
      %p147 = scmp.eq.s32.totalorder %s32, 0
      %p148 = por %p146, %p147
      %s150 = sadd.s32 %s149, 1
      %p153 = scmp.eq.s32.totalorder %s26, 1
      %p154 = scmp.ne.s32.totalorder %s149, %s151
      %p155 = scmp.eq.s32.totalorder %s26, 0
      %p156 = por %p154, %p155
      %p157 = scmp.ne.s32.totalorder %s149, %s151
      %p158 = scmp.eq.s32.totalorder %s31, 1
      %p159 = por %p157, %p158
      %p160 = scmp.ne.s32.totalorder %s151, %s152
      %p161 = scmp.eq.s32.totalorder %s31, 0
      %p162 = por %p160, %p161
      %p163 = scmp.ne.s32.totalorder %s151, %s152
      %p164 = scmp.eq.s32.totalorder %s32, 1
      %p165 = por %p163, %p164
      %p167 = scmp.ne.s32.totalorder %s152, %s166
      %p168 = scmp.eq.s32.totalorder %s32, 0
      %p169 = por %p167, %p168
      %s171 = sadd.s32 %s170, 1
      %p174 = scmp.eq.s32.totalorder %s26, 1
      %p175 = scmp.ne.s32.totalorder %s170, %s172
      %p176 = scmp.eq.s32.totalorder %s26, 0
      %p177 = por %p175, %p176
      %p178 = scmp.ne.s32.totalorder %s170, %s172
      %p179 = scmp.eq.s32.totalorder %s31, 1
      %p180 = por %p178, %p179
      %p181 = scmp.ne.s32.totalorder %s172, %s173
      %p182 = scmp.eq.s32.totalorder %s31, 0
      %p183 = por %p181, %p182
      %p184 = scmp.ne.s32.totalorder %s172, %s173
      %p185 = scmp.eq.s32.totalorder %s32, 1
      %p186 = por %p184, %p185
      %p188 = scmp.ne.s32.totalorder %s173, %s187
      %p189 = scmp.eq.s32.totalorder %s32, 0
      %p190 = por %p188, %p189
      %s192 = sadd.s32 %s191, 1
      %p195 = scmp.eq.s32.totalorder %s26, 1
      %p196 = scmp.ne.s32.totalorder %s191, %s193
      %p197 = scmp.eq.s32.totalorder %s26, 0
      %p198 = por %p196, %p197
      %p199 = scmp.ne.s32.totalorder %s191, %s193
      %p200 = scmp.eq.s32.totalorder %s31, 1
      %p201 = por %p199, %p200
      %p202 = scmp.ne.s32.totalorder %s193, %s194
      %p203 = scmp.eq.s32.totalorder %s31, 0
      %p204 = por %p202, %p203
      %p205 = scmp.ne.s32.totalorder %s193, %s194
      %p206 = scmp.eq.s32.totalorder %s32, 1
      %p207 = por %p205, %p206
      %p209 = scmp.ne.s32.totalorder %s194, %s208
      %p210 = scmp.eq.s32.totalorder %s32, 0
      %p211 = por %p209, %p210
      %s213 = sadd.s32 %s212, 1
      %p216 = scmp.eq.s32.totalorder %s26, 1
      %p217 = scmp.ne.s32.totalorder %s212, %s214
      %p218 = scmp.eq.s32.totalorder %s26, 0
      %p219 = por %p217, %p218
      %p220 = scmp.ne.s32.totalorder %s212, %s214
      %p221 = scmp.eq.s32.totalorder %s31, 1
      %p222 = por %p220, %p221
      %p223 = scmp.ne.s32.totalorder %s214, %s215
      %p224 = scmp.eq.s32.totalorder %s31, 0
      %p225 = por %p223, %p224
      %p226 = scmp.ne.s32.totalorder %s214, %s215
      %p227 = scmp.eq.s32.totalorder %s32, 1
      %p228 = por %p226, %p227
      %p230 = scmp.ne.s32.totalorder %s215, %s229
      %p231 = scmp.eq.s32.totalorder %s32, 0
      %p232 = por %p230, %p231
      %s234 = sadd.s32 %s233, 1
      %p237 = scmp.eq.s32.totalorder %s26, 1
      %p238 = scmp.ne.s32.totalorder %s233, %s235
      %p239 = scmp.eq.s32.totalorder %s26, 0
      %p240 = por %p238, %p239
      %p241 = scmp.ne.s32.totalorder %s233, %s235
      %p242 = scmp.eq.s32.totalorder %s31, 1
      %p243 = por %p241, %p242
      %p244 = scmp.ne.s32.totalorder %s235, %s236
      %p245 = scmp.eq.s32.totalorder %s31, 0
      %p246 = por %p244, %p245
      %p247 = scmp.ne.s32.totalorder %s235, %s236
      %p248 = scmp.eq.s32.totalorder %s32, 1
      %p249 = por %p247, %p248
      %p251 = scmp.ne.s32.totalorder %s236, %s250
      %p252 = scmp.eq.s32.totalorder %s32, 0
      %p253 = por %p251, %p252
      %s254 = ssub.s32 %s26, %s33
      %p255 = scmp.eq.s32.totalorder %s254, 0
      %s257 = sadd.s32 %s256, 1
      %s258 = scalar_select %p255, %s256, %s257
      %p261 = pneg %p255
      %p262 = scmp.eq.s32.totalorder %s26, 1
      %p263 = por %p261, %p262
      %p264 = scmp.ne.s32.totalorder %s256, %s259
      %p265 = scmp.eq.s32.totalorder %s26, 0
      %p266 = por %p264, %p265
      %p267 = scmp.ne.s32.totalorder %s256, %s259
      %p268 = scmp.eq.s32.totalorder %s31, 1
      %p269 = por %p267, %p268
      %p270 = scmp.ne.s32.totalorder %s259, %s260
      %p271 = scmp.eq.s32.totalorder %s31, 0
      %p272 = por %p270, %p271
      %p273 = scmp.ne.s32.totalorder %s259, %s260
      %p274 = scmp.eq.s32.totalorder %s32, 1
      %p275 = por %p273, %p274
      %p277 = scmp.ne.s32.totalorder %s260, %s276
      %p278 = scmp.eq.s32.totalorder %s32, 0
      %p279 = por %p277, %p278
      %p280 = scmp.le.s32.totalorder 1, %s26
      %p281 = scmp.lt.s32.totalorder %s26, 3
      %p282 = pnand %p280, %p281
      %p283 = pneg %p282
      // Predicated region
      $region9: #{tpu_custom_call.1} parent=5 // pred_check
        _
      $region10: #{tpu_custom_call.1} parent=5 // pred_check_branch
        %285 = sbr.rel (%p282) target = $region12
      $region11: #{tpu_custom_call.1} parent=5 // pred_region
        %s286 = ssub.s32 %s26, 1
        // Predicated region
        $region13: #{tpu_custom_call.1} parent=11 // pred_check
          %p287 = pneg %p99
        $region14: #{tpu_custom_call.1} parent=11 // pred_check_branch
          %289 = sbr.rel (%p287) target = $region16
        $region15: #{tpu_custom_call.1} parent=11 // pred_region
          _
        $region16: #{tpu_custom_call.1} parent=11 // pred_fallthru
          _
        // Predicated region
        $region17: #{tpu_custom_call.1} parent=11 // pred_check
          %p290 = pneg %p120
        $region18: #{tpu_custom_call.1} parent=11 // pred_check_branch
          %292 = sbr.rel (%p290) target = $region20
        $region19: #{tpu_custom_call.1} parent=11 // pred_region
          _
        $region20: #{tpu_custom_call.1} parent=11 // pred_fallthru
          _
        // Predicated region
        $region21: #{tpu_custom_call.1} parent=11 // pred_check
          %p293 = pneg %p141
        $region22: #{tpu_custom_call.1} parent=11 // pred_check_branch
          %295 = sbr.rel (%p293) target = $region24
        $region23: #{tpu_custom_call.1} parent=11 // pred_region
          _
        $region24: #{tpu_custom_call.1} parent=11 // pred_fallthru
          _
        // Predicated region
        $region25: #{tpu_custom_call.1} parent=11 // pred_check
          %p296 = pneg %p162
        $region26: #{tpu_custom_call.1} parent=11 // pred_check_branch
          %298 = sbr.rel (%p296) target = $region28
        $region27: #{tpu_custom_call.1} parent=11 // pred_region
          _
        $region28: #{tpu_custom_call.1} parent=11 // pred_fallthru
          _
        // Predicated region
        $region29: #{tpu_custom_call.1} parent=11 // pred_check
          %p299 = pneg %p183
        $region30: #{tpu_custom_call.1} parent=11 // pred_check_branch
          %301 = sbr.rel (%p299) target = $region32
        $region31: #{tpu_custom_call.1} parent=11 // pred_region
          _
        $region32: #{tpu_custom_call.1} parent=11 // pred_fallthru
          _
        // Predicated region
        $region33: #{tpu_custom_call.1} parent=11 // pred_check
          %p302 = pneg %p204
        $region34: #{tpu_custom_call.1} parent=11 // pred_check_branch
          %304 = sbr.rel (%p302) target = $region36
        $region35: #{tpu_custom_call.1} parent=11 // pred_region
          _
        $region36: #{tpu_custom_call.1} parent=11 // pred_fallthru
          _
        // Predicated region
        $region37: #{tpu_custom_call.1} parent=11 // pred_check
          %p305 = pneg %p225
        $region38: #{tpu_custom_call.1} parent=11 // pred_check_branch
          %307 = sbr.rel (%p305) target = $region40
        $region39: #{tpu_custom_call.1} parent=11 // pred_region
          _
        $region40: #{tpu_custom_call.1} parent=11 // pred_fallthru
          _
        // Predicated region
        $region41: #{tpu_custom_call.1} parent=11 // pred_check
          %p308 = pneg %p246
        $region42: #{tpu_custom_call.1} parent=11 // pred_check_branch
          %310 = sbr.rel (%p308) target = $region44
        $region43: #{tpu_custom_call.1} parent=11 // pred_region
          _
        $region44: #{tpu_custom_call.1} parent=11 // pred_fallthru
          _
      $region12: #{tpu_custom_call.1} parent=5 // pred_fallthru
        _
      %p311 = scmp.lt.s32.totalorder %s26, 2
      // Predicated region
      $region45: #{tpu_custom_call.1} parent=5 // pred_check
        %p312 = pneg %p311
      $region46: #{tpu_custom_call.1} parent=5 // pred_check_branch
        %314 = sbr.rel (%p312) target = $region48
      $region47: #{tpu_custom_call.1} parent=5 // pred_region
        // Predicated region
        $region49: #{tpu_custom_call.1} parent=47 // pred_check
          %p315 = pneg %p46
        $region50: #{tpu_custom_call.1} parent=47 // pred_check_branch
          %317 = sbr.rel (%p315) target = $region52
        $region51: #{tpu_custom_call.1} parent=47 // pred_region
          %s318 = sand.u32 %s36, 1
          %s319 = scalar_lea.sflag [#allocation4], %s318
          %s320 = sand.u32 %s36, 1
          %s321 = smul.addr %s320, 32
          %s322 = scalar_lea.vmem [#allocation3], %s321
          %324 = vsyncadd %s319, 0
          %s325 = smul.addr %s26, 8
          %s326 = scalar_lea.hbm %s0, %s325
          %s327 = sshll.u32 %s326, 4
          %s328 = int_to_ptr.hbm [resolvable:$true] %s327
          %s329 = sshll.u32 %s322, 4
          %s330 = int_to_ptr.vmem [resolvable:$true] %s329
          %335 = dma.hbm_to_vmem [thread:$0]  %s328, 512, %s330, %s319, 256, 128, 8
        $region52: #{tpu_custom_call.1} parent=47 // pred_fallthru
          _
        // Predicated region
        $region53: #{tpu_custom_call.1} parent=47 // pred_check
          %p336 = pneg %p72
        $region54: #{tpu_custom_call.1} parent=47 // pred_check_branch
          %338 = sbr.rel (%p336) target = $region56
        $region55: #{tpu_custom_call.1} parent=47 // pred_region
          %s339 = sand.u32 %s62, 1
          %s340 = scalar_lea.sflag [#allocation7], %s339
          %s341 = sand.u32 %s62, 1
          %s342 = smul.addr %s341, 32
          %s343 = scalar_lea.vmem [#allocation6], %s342
          %345 = vsyncadd %s340, 0
          %s346 = smul.addr %s26, 8
          %s347 = scalar_lea.hbm %s1, %s346
          %s348 = sshll.u32 %s347, 4
          %s349 = int_to_ptr.hbm [resolvable:$true] %s348
          %s350 = sshll.u32 %s343, 4
          %s351 = int_to_ptr.vmem [resolvable:$true] %s350
          %356 = dma.hbm_to_vmem [thread:$0]  %s349, 512, %s351, %s340, 256, 128, 8
        $region56: #{tpu_custom_call.1} parent=47 // pred_fallthru
          _
      $region48: #{tpu_custom_call.1} parent=5 // pred_fallthru
        _
      %p357 = scmp.le.s32.totalorder 1, %s26
      %p358 = scmp.lt.s32.totalorder %s26, 3
      %p359 = pnand %p357, %p358
      %p360 = pneg %p359
      // Predicated region
      $region57: #{tpu_custom_call.1} parent=5 // pred_check
        _
      $region58: #{tpu_custom_call.1} parent=5 // pred_check_branch
        %362 = sbr.rel (%p359) target = $region60
      $region59: #{tpu_custom_call.1} parent=5 // pred_region
        %s363 = ssub.s32 %s26, 1
        %s364 = sand.u32 %s39, 1
        %s365 = scalar_lea.sflag [#allocation4], %s364
        %s366 = sand.u32 %s39, 1
        %s367 = smul.addr %s366, 32
        %s368 = scalar_lea.vmem [#allocation3], %s367
        // Predicated region
        $region61: #{tpu_custom_call.1} parent=59 // pred_check
          %p369 = pneg %p52
        $region62: #{tpu_custom_call.1} parent=59 // pred_check_branch
          %371 = sbr.rel (%p369) target = $region64
        $region63: #{tpu_custom_call.1} parent=59 // pred_region
          %373 = dma.done %s365, 512
        $region64: #{tpu_custom_call.1} parent=59 // pred_fallthru
          _
        %s374 = sand.u32 %s65, 1
        %s375 = scalar_lea.sflag [#allocation7], %s374
        %s376 = sand.u32 %s65, 1
        %s377 = smul.addr %s376, 32
        %s378 = scalar_lea.vmem [#allocation6], %s377
        // Predicated region
        $region65: #{tpu_custom_call.1} parent=59 // pred_check
          %p379 = pneg %p78
        $region66: #{tpu_custom_call.1} parent=59 // pred_check_branch
          %381 = sbr.rel (%p379) target = $region68
        $region67: #{tpu_custom_call.1} parent=59 // pred_region
          %383 = dma.done %s375, 512
        $region68: #{tpu_custom_call.1} parent=59 // pred_fallthru
          _
        %s384 = sand.u32 %s39, 1
        %s385 = scalar_lea.sflag [#allocation4], %s384
        %s386 = sand.u32 %s39, 1
        %s387 = smul.addr %s386, 32
        %s388 = scalar_lea.vmem [#allocation3], %s387
        %p389 = pneg %p52
        %p390 = pneg %p49
        %s391 = sand.u32 %s65, 1
        %s392 = scalar_lea.sflag [#allocation7], %s391
        %s393 = sand.u32 %s65, 1
        %s394 = smul.addr %s393, 32
        %s395 = scalar_lea.vmem [#allocation6], %s394
        %p396 = pneg %p78
        %p397 = pneg %p75
        %p398 = pneg %p99
        %p399 = pneg %p96
        %p400 = pneg %p120
        %p401 = pneg %p117
        %p402 = pneg %p141
        %p403 = pneg %p138
        %p404 = pneg %p162
        %p405 = pneg %p159
        %p406 = pneg %p183
        %p407 = pneg %p180
        %p408 = pneg %p204
        %p409 = pneg %p201
        %p410 = pneg %p225
        %p411 = pneg %p222
        %p412 = pneg %p246
        %p413 = pneg %p243
        %p414 = pneg %p272
        %p415 = pneg %p269
        %s416 = sand.u32 %s259, 1
        %s417 = scalar_lea.sflag [#allocation5], %s416
        %s418 = sand.u32 %s259, 1
        %s419 = smul.addr %s418, 8
        %s420 = scalar_lea.vmem [#allocation8], %s419
        %v421 = vld [vmem:[%s2] sm:$0x1]
        %v422 = vld [vmem:[%s3] sm:$0x1]
        %v423 = vld [vmem:[%s4] sm:$0xff]
        %v424 = vld [vmem:[%s4 + $0x8] sm:$0xff]
        %v425 = vld [vmem:[%s4 + $0x10] sm:$0xff]
        %v426 = vld [vmem:[%s4 + $0x18] sm:$0xff]
        %v427 = vld [vmem:[%s5] sm:$0x1]
        %v428 = vld [vmem:[%s6] sm:$0x1]
        %s429 = sld [smem:[#allocation2]]
        %v430 = vld [vmem:[%s8] sm:$0x1]
        %v431 = vld [vmem:[%s9] sm:$0x1]
        %v432 = vld [vmem:[%s368] sm:$0xff]
        %vm433 = vcmask 261120
        %v434 = vsel %vm433, %v432, 0.0
        %435 = vadd.xlane.f32.xlu0 %v434
        %v436 = vpop.xlane.xlu0 %435
        %v437 = vrcp.pop 32.0
        %v438 = vmul.f32 32.0, %v437
        %v439 = vsub.f32 1.0, %v438
        %v440 = vmul.f32 %v437, %v439
        %v441 = vadd.f32 %v437, %v440
        %vm442 = vweird.f32 %v437
        %v443 = vsel %vm442, %v437, %v441
        %v444 = vmul.f32 %v436, %v443
        %v445 = vsub.f32 %v432, %v444
        %v446 = vmul.f32 %v445, %v445
        %v447 = vsel %vm433, %v446, 0.0
        %448 = vadd.xlane.f32.xlu0 %v447
        %v449 = vpop.xlane.xlu0 %448
        %v450 = vmul.f32 %v449, %v443
        %v451 = vadd.f32 %v450, 1e-05
        %v452 = vrsqrt.pop %v451
        %v453 = vmul.f32 %v452, %v451
        %v454 = vmul.f32 %v453, %v452
        %v455 = vmul.f32 0.5, %v454
        %v456 = vsub.f32 1.5, %v455
        %v457 = vmul.f32 %v452, %v456
        %vm458 = vweird.f32 %v451
        %vm459 = vweird.f32 %v452
        %vm460 = vmor %vm458, %vm459
        %v461 = vsel %vm460, %v452, %v457
        %v462 = vmul.f32 %v445, %v461
        %v464 = vperm.slane %v421, 0
        %v466 = vmul.f32 %v462, %v464
        %v468 = vperm.slane %v422, 0
        %v470 = vadd.f32 %v466, %v468
        %v472 = vperm.slane %v427, 0
        %v475 = vsel %vm433, %v470, 0
        %477 = vmatpush.msra.mxu0 0.0
        %478 = vmatpush.msra.mxu0 0.0
        %479 = vmatpush.msra.mxu0 0.0
        %480 = vmatpush.msra.mxu0 0.0
        %481 = vmatpush.msra.mxu0 0.0
        %482 = vmatpush.msra.mxu0 0.0
        %483 = vmatpush.msra.mxu0 0.0
        %484 = vmatpush.msra.mxu0 0.0
        %485 = vmatpush.msra.mxu0 0.0
        %486 = vmatpush.msra.mxu0 0.0
        %487 = vmatpush.msra.mxu0 0.0
        %488 = vmatpush.msra.mxu0 0.0
        %489 = vmatpush.msra.mxu0 %v426
        %490 = vmatpush.msra.mxu0 %v425
        %491 = vmatpush.msra.mxu0 %v424
        %492 = vmatpush.msra.mxu0 %v423
        %493 = vmatmul.f32.gmra.mxu0 %v475
        %v494 = vpop.f32.mrf.mxu0
        %v495 = vadd.f32 %v472, %v494
        %496 = vdwg.mxu0
        %v497 = vmax.f32 %v495, 0.0
        %v499 = vperm.slane %v428, 0
        %v501 = vmul.f32 %v497, %v499
        %vm502 = vcmask 130048
        %v503 = vsel %vm502, %v501, 0.0
        %504 = vadd.xlane.f32.xlu0 %v503
        %v505 = vpop.xlane.xlu0 %504
        %v506 = vstv %s429
        %v507 = vadd.f32 %v505, %v506
        %v508 = vmax.f32 %v507, 0.0
        %s509 = scalar_lea.vmem %s368, 8 [#allocation3]
        %v510 = vld [vmem:[%s509] sm:$0xff]
        %v511 = vsel %vm433, %v510, 0.0
        %512 = vadd.xlane.f32.xlu0 %v511
        %v513 = vpop.xlane.xlu0 %512
        %v514 = vmul.f32 %v513, %v443
        %v515 = vsub.f32 %v510, %v514
        %v516 = vmul.f32 %v515, %v515
        %v517 = vsel %vm433, %v516, 0.0
        %518 = vadd.xlane.f32.xlu0 %v517
        %v519 = vpop.xlane.xlu0 %518
        %v520 = vmul.f32 %v519, %v443
        %v521 = vadd.f32 %v520, 1e-05
        %v522 = vrsqrt.pop %v521
        %v523 = vmul.f32 %v522, %v521
        %v524 = vmul.f32 %v523, %v522
        %v525 = vmul.f32 0.5, %v524
        %v526 = vsub.f32 1.5, %v525
        %v527 = vmul.f32 %v522, %v526
        %vm528 = vweird.f32 %v521
        %vm529 = vweird.f32 %v522
        %vm530 = vmor %vm528, %vm529
        %v531 = vsel %vm530, %v522, %v527
        %v532 = vmul.f32 %v515, %v531
        %v533 = vmul.f32 %v532, %v464
        %v534 = vadd.f32 %v533, %v468
        %v536 = vsel %vm433, %v534, 0
        %538 = vmatpush.msra.mxu0 0.0
        %539 = vmatpush.msra.mxu0 0.0
        %540 = vmatpush.msra.mxu0 0.0
        %541 = vmatpush.msra.mxu0 0.0
        %542 = vmatpush.msra.mxu0 0.0
        %543 = vmatpush.msra.mxu0 0.0
        %544 = vmatpush.msra.mxu0 0.0
        %545 = vmatpush.msra.mxu0 0.0
        %546 = vmatpush.msra.mxu0 0.0
        %547 = vmatpush.msra.mxu0 0.0
        %548 = vmatpush.msra.mxu0 0.0
        %549 = vmatpush.msra.mxu0 0.0
        %550 = vmatpush.msra.mxu0 %v426
        %551 = vmatpush.msra.mxu0 %v425
        %552 = vmatpush.msra.mxu0 %v424
        %553 = vmatpush.msra.mxu0 %v423
        %554 = vmatmul.f32.gmra.mxu0 %v536
        %v555 = vpop.f32.mrf.mxu0
        %v556 = vadd.f32 %v472, %v555
        %557 = vdwg.mxu0
        %v558 = vmax.f32 %v556, 0.0
        %v559 = vmul.f32 %v558, %v499
        %v560 = vsel %vm502, %v559, 0.0
        %561 = vadd.xlane.f32.xlu0 %v560
        %v562 = vpop.xlane.xlu0 %561
        %v563 = vadd.f32 %v562, %v506
        %v564 = vmax.f32 %v563, 0.0
        %s565 = scalar_lea.vmem %s368, 16 [#allocation3]
        %v566 = vld [vmem:[%s565] sm:$0xff]
        %v567 = vsel %vm433, %v566, 0.0
        %568 = vadd.xlane.f32.xlu0 %v567
        %v569 = vpop.xlane.xlu0 %568
        %v570 = vmul.f32 %v569, %v443
        %v571 = vsub.f32 %v566, %v570
        %v572 = vmul.f32 %v571, %v571
        %v573 = vsel %vm433, %v572, 0.0
        %574 = vadd.xlane.f32.xlu0 %v573
        %v575 = vpop.xlane.xlu0 %574
        %v576 = vmul.f32 %v575, %v443
        %v577 = vadd.f32 %v576, 1e-05
        %v578 = vrsqrt.pop %v577
        %v579 = vmul.f32 %v578, %v577
        %v580 = vmul.f32 %v579, %v578
        %v581 = vmul.f32 0.5, %v580
        %v582 = vsub.f32 1.5, %v581
        %v583 = vmul.f32 %v578, %v582
        %vm584 = vweird.f32 %v577
        %vm585 = vweird.f32 %v578
        %vm586 = vmor %vm584, %vm585
        %v587 = vsel %vm586, %v578, %v583
        %v588 = vmul.f32 %v571, %v587
        %v589 = vmul.f32 %v588, %v464
        %v590 = vadd.f32 %v589, %v468
        %v592 = vsel %vm433, %v590, 0
        %594 = vmatpush.msra.mxu0 0.0
        %595 = vmatpush.msra.mxu0 0.0
        %596 = vmatpush.msra.mxu0 0.0
        %597 = vmatpush.msra.mxu0 0.0
        %598 = vmatpush.msra.mxu0 0.0
        %599 = vmatpush.msra.mxu0 0.0
        %600 = vmatpush.msra.mxu0 0.0
        %601 = vmatpush.msra.mxu0 0.0
        %602 = vmatpush.msra.mxu0 0.0
        %603 = vmatpush.msra.mxu0 0.0
        %604 = vmatpush.msra.mxu0 0.0
        %605 = vmatpush.msra.mxu0 0.0
        %606 = vmatpush.msra.mxu0 %v426
        %607 = vmatpush.msra.mxu0 %v425
        %608 = vmatpush.msra.mxu0 %v424
        %609 = vmatpush.msra.mxu0 %v423
        %610 = vmatmul.f32.gmra.mxu0 %v592
        %v611 = vpop.f32.mrf.mxu0
        %v612 = vadd.f32 %v472, %v611
        %613 = vdwg.mxu0
        %v614 = vmax.f32 %v612, 0.0
        %v615 = vmul.f32 %v614, %v499
        %v616 = vsel %vm502, %v615, 0.0
        %617 = vadd.xlane.f32.xlu0 %v616
        %v618 = vpop.xlane.xlu0 %617
        %v619 = vadd.f32 %v618, %v506
        %v620 = vmax.f32 %v619, 0.0
        %s621 = scalar_lea.vmem %s368, 24 [#allocation3]
        %v622 = vld [vmem:[%s621] sm:$0xff]
        %v623 = vsel %vm433, %v622, 0.0
        %624 = vadd.xlane.f32.xlu0 %v623
        %v625 = vpop.xlane.xlu0 %624
        %v626 = vmul.f32 %v625, %v443
        %v627 = vsub.f32 %v622, %v626
        %v628 = vmul.f32 %v627, %v627
        %v629 = vsel %vm433, %v628, 0.0
        %630 = vadd.xlane.f32.xlu0 %v629
        %v631 = vpop.xlane.xlu0 %630
        %v632 = vmul.f32 %v631, %v443
        %v633 = vadd.f32 %v632, 1e-05
        %v634 = vrsqrt.pop %v633
        %v635 = vmul.f32 %v634, %v633
        %v636 = vmul.f32 %v635, %v634
        %v637 = vmul.f32 0.5, %v636
        %v638 = vsub.f32 1.5, %v637
        %v639 = vmul.f32 %v634, %v638
        %vm640 = vweird.f32 %v633
        %vm641 = vweird.f32 %v634
        %vm642 = vmor %vm640, %vm641
        %v643 = vsel %vm642, %v634, %v639
        %v644 = vmul.f32 %v627, %v643
        %v645 = vmul.f32 %v644, %v464
        %v646 = vadd.f32 %v645, %v468
        %v648 = vsel %vm433, %v646, 0
        %650 = vmatpush.msra.mxu0 0.0
        %651 = vmatpush.msra.mxu0 0.0
        %652 = vmatpush.msra.mxu0 0.0
        %653 = vmatpush.msra.mxu0 0.0
        %654 = vmatpush.msra.mxu0 0.0
        %655 = vmatpush.msra.mxu0 0.0
        %656 = vmatpush.msra.mxu0 0.0
        %657 = vmatpush.msra.mxu0 0.0
        %658 = vmatpush.msra.mxu0 0.0
        %659 = vmatpush.msra.mxu0 0.0
        %660 = vmatpush.msra.mxu0 0.0
        %661 = vmatpush.msra.mxu0 0.0
        %662 = vmatpush.msra.mxu0 %v426
        %663 = vmatpush.msra.mxu0 %v425
        %664 = vmatpush.msra.mxu0 %v424
        %665 = vmatpush.msra.mxu0 %v423
        %666 = vmatmul.f32.gmra.mxu0 %v648
        %v667 = vpop.f32.mrf.mxu0
        %v668 = vadd.f32 %v472, %v667
        %669 = vdwg.mxu0
        %v670 = vmax.f32 %v668, 0.0
        %v671 = vmul.f32 %v670, %v499
        %v672 = vsel %vm502, %v671, 0.0
        %673 = vadd.xlane.f32.xlu0 %v672
        %v674 = vpop.xlane.xlu0 %673
        %v675 = vadd.f32 %v674, %v506
        %v676 = vmax.f32 %v675, 0.0
        %v677 = vmax.f32 %v508, %v564
        %v678 = vmax.f32 %v677, %v620
        %v679 = vmax.f32 %v678, %v676
        %v680 = vsub.f32 %v508, %v679
        %v681 = vmul.f32 %v680, 1.442695
        %v682 = vpow.pop %v681
        %v683 = vsub.f32 %v564, %v679
        %v684 = vmul.f32 %v683, 1.442695
        %v685 = vpow.pop %v684
        %v686 = vsub.f32 %v620, %v679
        %v687 = vmul.f32 %v686, 1.442695
        %v688 = vpow.pop %v687
        %v689 = vsub.f32 %v676, %v679
        %v690 = vmul.f32 %v689, 1.442695
        %v691 = vpow.pop %v690
        %v692 = vadd.f32 %v682, %v685
        %v693 = vadd.f32 %v692, %v688
        %v694 = vadd.f32 %v693, %v691
        %v695 = vrcp.pop %v694
        %v696 = vmul.f32 %v694, %v695
        %v697 = vsub.f32 1.0, %v696
        %v698 = vmul.f32 %v695, %v697
        %v699 = vadd.f32 %v695, %v698
        %vm700 = vweird.f32 %v694
        %vm701 = vweird.f32 %v695
        %vm702 = vmor %vm700, %vm701
        %v703 = vsel %vm702, %v695, %v699
        %v704 = vand.u32 2147483647, %v694
        %vm705 = vcmp.eq.f32.partialorder %v704, 8.507059e+37
        %v706 = vand.u32 %v694, 2147483648
        %v707 = vor.u32 1.1754944e-38, %v706
        %v708 = vsel %vm705, %v707, %v703
        %v709 = vmul.f32 1.0, %v708
        %v710 = vld [vmem:[%s378] sm:$0xff]
        %711 = vadd.xlane.f32.xlu0 %v710
        %v712 = vpop.xlane.xlu0 %711
        %v713 = vrcp.pop 128.0
        %v714 = vmul.f32 128.0, %v713
        %v715 = vsub.f32 1.0, %v714
        %v716 = vmul.f32 %v713, %v715
        %v717 = vadd.f32 %v713, %v716
        %vm718 = vweird.f32 %v713
        %v719 = vsel %vm718, %v713, %v717
        %v720 = vmul.f32 %v712, %v719
        %v721 = vsub.f32 %v710, %v720
        %v722 = vmul.f32 %v721, %v721
        %723 = vadd.xlane.f32.xlu0 %v722
        %v724 = vpop.xlane.xlu0 %723
        %v725 = vmul.f32 %v724, %v719
        %v726 = vadd.f32 %v725, 1e-05
        %v727 = vrsqrt.pop %v726
        %v728 = vmul.f32 %v727, %v726
        %v729 = vmul.f32 %v728, %v727
        %v730 = vmul.f32 0.5, %v729
        %v731 = vsub.f32 1.5, %v730
        %v732 = vmul.f32 %v727, %v731
        %vm733 = vweird.f32 %v726
        %vm734 = vweird.f32 %v727
        %vm735 = vmor %vm733, %vm734
        %v736 = vsel %vm735, %v727, %v732
        %v737 = vmul.f32 %v721, %v736
        %v739 = vperm.slane %v430, 0
        %v741 = vmul.f32 %v737, %v739
        %v743 = vperm.slane %v431, 0
        %v745 = vadd.f32 %v741, %v743
        %v746 = vmul.f32 %v682, %v709
        %v747 = vmul.f32 %v746, %v745
        %s748 = scalar_lea.vmem %s378, 8 [#allocation6]
        %v749 = vld [vmem:[%s748] sm:$0xff]
        %750 = vadd.xlane.f32.xlu0 %v749
        %v751 = vpop.xlane.xlu0 %750
        %v752 = vmul.f32 %v751, %v719
        %v753 = vsub.f32 %v749, %v752
        %v754 = vmul.f32 %v753, %v753
        %755 = vadd.xlane.f32.xlu0 %v754
        %v756 = vpop.xlane.xlu0 %755
        %v757 = vmul.f32 %v756, %v719
        %v758 = vadd.f32 %v757, 1e-05
        %v759 = vrsqrt.pop %v758
        %v760 = vmul.f32 %v759, %v758
        %v761 = vmul.f32 %v760, %v759
        %v762 = vmul.f32 0.5, %v761
        %v763 = vsub.f32 1.5, %v762
        %v764 = vmul.f32 %v759, %v763
        %vm765 = vweird.f32 %v758
        %vm766 = vweird.f32 %v759
        %vm767 = vmor %vm765, %vm766
        %v768 = vsel %vm767, %v759, %v764
        %v769 = vmul.f32 %v753, %v768
        %v770 = vmul.f32 %v769, %v739
        %v771 = vadd.f32 %v770, %v743
        %v772 = vmul.f32 %v685, %v709
        %v773 = vmul.f32 %v772, %v771
        %v774 = vadd.f32 %v747, %v773
        %s775 = scalar_lea.vmem %s378, 16 [#allocation6]
        %v776 = vld [vmem:[%s775] sm:$0xff]
        %777 = vadd.xlane.f32.xlu0 %v776
        %v778 = vpop.xlane.xlu0 %777
        %v779 = vmul.f32 %v778, %v719
        %v780 = vsub.f32 %v776, %v779
        %v781 = vmul.f32 %v780, %v780
        %782 = vadd.xlane.f32.xlu0 %v781
        %v783 = vpop.xlane.xlu0 %782
        %v784 = vmul.f32 %v783, %v719
        %v785 = vadd.f32 %v784, 1e-05
        %v786 = vrsqrt.pop %v785
        %v787 = vmul.f32 %v786, %v785
        %v788 = vmul.f32 %v787, %v786
        %v789 = vmul.f32 0.5, %v788
        %v790 = vsub.f32 1.5, %v789
        %v791 = vmul.f32 %v786, %v790
        %vm792 = vweird.f32 %v785
        %vm793 = vweird.f32 %v786
        %vm794 = vmor %vm792, %vm793
        %v795 = vsel %vm794, %v786, %v791
        %v796 = vmul.f32 %v780, %v795
        %v797 = vmul.f32 %v796, %v739
        %v798 = vadd.f32 %v797, %v743
        %v799 = vmul.f32 %v688, %v709
        %v800 = vmul.f32 %v799, %v798
        %v801 = vadd.f32 %v774, %v800
        %s802 = scalar_lea.vmem %s378, 24 [#allocation6]
        %v803 = vld [vmem:[%s802] sm:$0xff]
        %804 = vadd.xlane.f32.xlu0 %v803
        %v805 = vpop.xlane.xlu0 %804
        %v806 = vmul.f32 %v805, %v719
        %v807 = vsub.f32 %v803, %v806
        %v808 = vmul.f32 %v807, %v807
        %809 = vadd.xlane.f32.xlu0 %v808
        %v810 = vpop.xlane.xlu0 %809
        %v811 = vmul.f32 %v810, %v719
        %v812 = vadd.f32 %v811, 1e-05
        %v813 = vrsqrt.pop %v812
        %v814 = vmul.f32 %v813, %v812
        %v815 = vmul.f32 %v814, %v813
        %v816 = vmul.f32 0.5, %v815
        %v817 = vsub.f32 1.5, %v816
        %v818 = vmul.f32 %v813, %v817
        %vm819 = vweird.f32 %v812
        %vm820 = vweird.f32 %v813
        %vm821 = vmor %vm819, %vm820
        %v822 = vsel %vm821, %v813, %v818
        %v823 = vmul.f32 %v807, %v822
        %v824 = vmul.f32 %v823, %v739
        %v825 = vadd.f32 %v824, %v743
        %v826 = vmul.f32 %v691, %v709
        %v827 = vmul.f32 %v826, %v825
        %v828 = vadd.f32 %v801, %v827
        %829 = vst [vmem:[%s420] sm:$0xff] %v828
        %s830 = sand.u32 %s259, 1
        %s831 = scalar_lea.sflag [#allocation5], %s830
        %s832 = sand.u32 %s259, 1
        %s833 = smul.addr %s832, 8
        %s834 = scalar_lea.vmem [#allocation8], %s833
        // Predicated region
        $region69: #{tpu_custom_call.1} parent=59 // pred_check
          %p835 = pneg %p269
        $region70: #{tpu_custom_call.1} parent=59 // pred_check_branch
          %837 = sbr.rel (%p835) target = $region72
        $region71: #{tpu_custom_call.1} parent=59 // pred_region
          %839 = vsyncadd %s831, 0
          %s840 = smul.addr %s31, 8
          %s841 = scalar_lea.hbm %s10, %s840
          %s843 = sshll.u32 %s834, 4
          %s844 = int_to_ptr.vmem [resolvable:$true] %s843
          %s845 = sshll.u32 %s841, 4
          %s846 = int_to_ptr.hbm [resolvable:$true] %s845
          %848 = dma.vmem_to_hbm [thread:$0]  %s844, 128, %s846, %s831
        $region72: #{tpu_custom_call.1} parent=59 // pred_fallthru
          _
      $region60: #{tpu_custom_call.1} parent=5 // pred_fallthru
        _
      %p849 = scmp.le.s32.totalorder 2, %s26
      // Predicated region
      $region73: #{tpu_custom_call.1} parent=5 // pred_check
        %p850 = pneg %p849
      $region74: #{tpu_custom_call.1} parent=5 // pred_check_branch
        %852 = sbr.rel (%p850) target = $region76
      $region75: #{tpu_custom_call.1} parent=5 // pred_region
        %s853 = ssub.s32 %s26, 2
        // Predicated region
        $region77: #{tpu_custom_call.1} parent=75 // pred_check
          %p854 = pneg %p275
        $region78: #{tpu_custom_call.1} parent=75 // pred_check_branch
          %856 = sbr.rel (%p854) target = $region80
        $region79: #{tpu_custom_call.1} parent=75 // pred_region
          %s857 = sand.u32 %s260, 1
          %s858 = scalar_lea.sflag [#allocation5], %s857
          %s859 = sand.u32 %s260, 1
          %s860 = smul.addr %s859, 8
          %s861 = scalar_lea.vmem [#allocation8], %s860
          %863 = dma.done %s858, 128
        $region80: #{tpu_custom_call.1} parent=75 // pred_fallthru
          _
      $region76: #{tpu_custom_call.1} parent=5 // pred_fallthru
        _
    $region6: #{tpu_custom_call.1} parent=1 // loop_footer
      %s30 = sadd.s32 1, %s26
    $region7: #{tpu_custom_call.1} parent=1 // loop_footer_branch
      %25 = sbr.rel target = $region3
    $region8: #{tpu_custom_call.1} parent=1 // loop_exit
      _
    %864 = vsyncpa [#allocation4], 1
    %s865 = scalar_lea.sflag [#allocation4], 1
    %866 = vsyncpa %s865, 1
    %867 = vsyncpa [#allocation7], 1
    %s868 = scalar_lea.sflag [#allocation7], 1
    %869 = vsyncpa %s868, 1
    %870 = vsyncpa [#allocation5], 1
    %s871 = scalar_lea.sflag [#allocation5], 1
    %872 = vsyncpa %s871, 1

</llo_original>
